<compile_context>
chip_gen: v5e
topology: v5e:2x2
jax: 0.10.0
libtpu: 0.0.40
codegen_flags: <defaults>
</compile_context>

<pallas_src>
import functools

import jax
import jax.numpy as jnp
from jax.experimental import pallas as pl
from jax.experimental.pallas import tpu as pltpu


def _siglip_attn_kernel(x_ref, wqkv_ref, bqkv_ref, wo_ref, bo_ref, *rest,
                        heads_per_block, head_dim, compute_dtype, with_aw):
    if with_aw:
        out_ref, aw_ref, acc_ref = rest
    else:
        out_ref, acc_ref = rest
        aw_ref = None

    hg, D = heads_per_block, head_dim
    g = pl.program_id(1)

    @pl.when(g == 0)
    def _():
        acc_ref[...] = jnp.zeros_like(acc_ref)

    S = x_ref.shape[1]
    x = x_ref[0].astype(compute_dtype)                                # (S, E)

    # Per-head-group fused Q/K/V projection: one (S,E)@(E,3*hg*D) MXU matmul
    # with fp32 accumulation and a single fused bias add.  The softmax scale
    # is already folded into the Q columns/bias host-side.
    qkv = jnp.dot(x, wqkv_ref[0],
                  preferred_element_type=jnp.float32) + bqkv_ref[0]   # (S, 3*hg*D)

    def to_heads(t):                                   # (S, hg*D) -> (hg, S, D)
        return t.reshape(S, hg, D).transpose(1, 0, 2)

    qh = to_heads(qkv[:, 0 * hg * D:1 * hg * D]).astype(compute_dtype)
    kh = to_heads(qkv[:, 1 * hg * D:2 * hg * D]).astype(compute_dtype)
    vh = to_heads(qkv[:, 2 * hg * D:3 * hg * D]).astype(compute_dtype)

    # Scores + softmax in fp32, batched over the hg heads of this group
    # (single batched dot_general -> dense vmatmul stream, no per-head unroll).
    scores = jnp.einsum('hsd,hpd->hsp', qh, kh,
                        preferred_element_type=jnp.float32)           # (hg, S, S)
    scores = scores - jnp.max(scores, axis=-1, keepdims=True)
    p = jnp.exp(scores)
    # Exact per-row reciprocal (hg*S divides) so attn_weights rows sum to 1,
    # matching torch's softmax; the (hg,S,S) rescale is a cheap VPU multiply.
    p = p * (1.0 / jnp.sum(p, axis=-1, keepdims=True))

    # TODO(synk): attention dropout (p=config.attention_dropout) is a no-op in
    # eval mode and is not implemented in-kernel.
    if with_aw:
        aw_ref[0] = p.astype(aw_ref.dtype)

    ctx = jnp.einsum('hsp,hpd->hsd', p.astype(compute_dtype), vh,
                     preferred_element_type=jnp.float32)              # (hg, S, D)
    ctx = ctx.transpose(1, 0, 2).reshape(S, hg * D)                   # (S, hg*D)

    # Partial out-projection for this head group, accumulated across groups.
    acc_ref[...] += jnp.dot(ctx.astype(compute_dtype), wo_ref[0],
                            preferred_element_type=jnp.float32)       # (S, E)

    @pl.when(g == pl.num_programs(1) - 1)
    def _():
        out_ref[0] = (acc_ref[...] + bo_ref[...]).astype(out_ref.dtype)


def _vmem_bytes_estimate(*, S, E, hg, D, x_isz, out_isz, aw_isz, c_isz, with_aw):
    """Rough per-step VMEM residency (double-buffered blocks + intermediates)."""
    blocks = 2 * (S * E * x_isz                 # x block
                  + E * 3 * hg * D * c_isz      # fused qkv weight block
                  + 3 * hg * D * 4              # fused qkv bias block
                  + hg * D * E * c_isz          # out-proj weight rows
                  + E * 4                       # out-proj bias
                  + S * E * out_isz)            # attn_output block
    if with_aw:
        blocks += 2 * hg * S * S * aw_isz       # attn_weights block
    scratch = S * E * 4                         # fp32 accumulator
    inter = (S * 3 * hg * D * 4                 # qkv (fp32)
             + 3 * S * hg * D * (4 + c_isz)     # per-head views + casts
             + 2 * hg * S * S * 4               # scores + probs (fp32)
             + hg * S * D * (4 + c_isz)         # ctx
             + S * E * 4)                       # partial out-proj product
    return blocks + scratch + inter


def siglip_attention(hidden_states, wq, bq, wk, bk, wv, bv, wo, bo, *,
                     num_heads, compute_dtype=jnp.bfloat16,
                     heads_per_block=None, return_attn_weights=True):
    """SiglipAttention forward.

    hidden_states: (B, S, E); weights (E, E) stored as (in, out); biases (E,).
    compute_dtype: dtype fed to the MXU (default bf16); accumulation and the
    softmax stay fp32.  heads_per_block: heads processed per grid step (must
    divide num_heads); auto-sized from VMEM capacity if None.
    return_attn_weights=False skips the (B,H,S,S) writeback (biggest HBM cost).
    """
    B, S, E = hidden_states.shape
    assert E % num_heads == 0
    H = num_heads
    D = E // H
    scale = float(D) ** -0.5
    compute_dtype = jnp.dtype(compute_dtype)
    out_dtype = hidden_states.dtype
    aw_dtype = hidden_states.dtype      # torch: softmax(fp32).to(query.dtype)

    x_isz = jnp.dtype(hidden_states.dtype).itemsize
    c_isz = compute_dtype.itemsize
    out_isz = jnp.dtype(out_dtype).itemsize
    aw_isz = jnp.dtype(aw_dtype).itemsize

    try:
        vmem_cap = int(pltpu.get_tpu_info().vmem_capacity_bytes)
    except Exception:
        vmem_cap = 64 * 2 ** 20         # conservative (v7x per-TC size)

    est_fn = functools.partial(_vmem_bytes_estimate, S=S, E=E, D=D,
                               x_isz=x_isz, out_isz=out_isz, aw_isz=aw_isz,
                               c_isz=c_isz, with_aw=return_attn_weights)

    if heads_per_block is None:
        # Largest head group whose estimated residency fits ~60% of VMEM
        # (leaves headroom for compiler scratch and pipeline overlap).
        budget = int(0.6 * vmem_cap)
        heads_per_block = 1
        for d in range(1, H + 1):
            if H % d == 0 and est_fn(hg=d) <= budget:
                heads_per_block = d
    assert H % heads_per_block == 0, "heads_per_block must divide num_heads"
    hg = heads_per_block
    G = H // hg

    # Generation-aware scoped-VMEM cap: ~0.8 * physical per-core VMEM
    # (≈51 MiB on v7x, ≈102 MiB on v5e/v6e), never below what we actually need.
    vmem_limit = int(min(0.8 * vmem_cap, max(24 * 2 ** 20, 1.3 * est_fn(hg=hg))))

    # ---- Host-side weight preparation -------------------------------------
    # Fold the softmax scale into the Q projection (zero cost, removes an
    # (hg,S,S) fp32 multiply per grid step).
    wq_s = wq * scale
    bq_s = bq * scale

    def group_cols(w):   # (E, E) -> (G, E, hg*D): columns grouped by head group
        return w.reshape(E, G, hg * D).transpose(1, 0, 2)

    w_fused = jnp.concatenate(
        [group_cols(wq_s), group_cols(wk), group_cols(wv)],
        axis=2).astype(compute_dtype)                              # (G, E, 3*hg*D)
    b_fused = jnp.concatenate(
        [bq_s.reshape(G, 1, hg * D), bk.reshape(G, 1, hg * D),
         bv.reshape(G, 1, hg * D)], axis=2).astype(jnp.float32)    # (G, 1, 3*hg*D)
    wo_g = wo.reshape(G, hg * D, E).astype(compute_dtype)          # rows per group
    bo2 = bo.reshape(1, E).astype(jnp.float32)

    # ---- Grid / specs ------------------------------------------------------
    kernel = functools.partial(
        _siglip_attn_kernel, heads_per_block=hg, head_dim=D,
        compute_dtype=compute_dtype, with_aw=return_attn_weights)

    in_specs = [
        pl.BlockSpec((1, S, E), lambda b, g: (b, 0, 0)),            # x (held over g)
        pl.BlockSpec((1, E, 3 * hg * D), lambda b, g: (g, 0, 0)),   # fused qkv W
        pl.BlockSpec((1, 1, 3 * hg * D), lambda b, g: (g, 0, 0)),   # fused qkv b
        pl.BlockSpec((1, hg * D, E), lambda b, g: (g, 0, 0)),       # out-proj rows
        pl.BlockSpec((1, E), lambda b, g: (0, 0)),                  # out-proj bias
    ]
    out_specs = [pl.BlockSpec((1, S, E), lambda b, g: (b, 0, 0))]   # accumulated
    out_shape = [jax.ShapeDtypeStruct((B, S, E), out_dtype)]
    if return_attn_weights:
        out_specs.append(pl.BlockSpec((1, hg, S, S), lambda b, g: (b, g, 0, 0)))
        out_shape.append(jax.ShapeDtypeStruct((B, H, S, S), aw_dtype))

    grid_spec = pltpu.PrefetchScalarGridSpec(
        num_scalar_prefetch=0,
        grid=(B, G),
        in_specs=in_specs,
        out_specs=out_specs,
        scratch_shapes=[pltpu.VMEM((S, E), jnp.float32)],           # fp32 out accum
    )

    results = pl.pallas_call(
        kernel,
        out_shape=tuple(out_shape),
        grid_spec=grid_spec,
        compiler_params=pltpu.CompilerParams(
            # Batch axis parallel (megacore); group axis is the reduction axis
            # of the out-projection accumulator -> "arbitrary" and last.
            dimension_semantics=("parallel", "arbitrary"),
            vmem_limit_bytes=vmem_limit),
    )(hidden_states, w_fused, b_fused, wo_g, bo2)

    if return_attn_weights:
        attn_out, attn_w = results
        return attn_out, attn_w
    attn_out = results[0] if isinstance(results, (tuple, list)) else results
    return attn_out, None


def _reference(hidden_states, wq, bq, wk, bk, wv, bv, wo, bo, *, num_heads):
    B, S, E = hidden_states.shape
    D = E // num_heads
    scale = D ** -0.5
    q = hidden_states @ wq + bq
    k = hidden_states @ wk + bk
    v = hidden_states @ wv + bv
    q = q.reshape(B, S, num_heads, D).transpose(0, 2, 1, 3)
    k = k.reshape(B, S, num_heads, D).transpose(0, 2, 1, 3)
    v = v.reshape(B, S, num_heads, D).transpose(0, 2, 1, 3)
    aw = jnp.einsum('bhsd,bhpd->bhsp', q, k) * scale
    aw = jax.nn.softmax(aw.astype(jnp.float32), axis=-1)
    ctx = jnp.einsum('bhsp,bhpd->bhsd', aw, v)
    ctx = ctx.transpose(0, 2, 1, 3).reshape(B, S, E)
    out = ctx @ wo + bo
    return out, aw.astype(hidden_states.dtype)


if __name__ == "__main__":
    # Small shapes implied by the forward: (batch, seq, hidden), heads.
    B, S, E, H = 2, 8, 32, 4

    key = jax.random.PRNGKey(0)
    ks = jax.random.split(key, 9)
    x = jax.random.normal(ks[0], (B, S, E), dtype=jnp.float32)
    # Deterministic parameter init (weights stored as (in, out)).
    wq = 0.05 * jax.random.normal(ks[1], (E, E), dtype=jnp.float32)
    wk = 0.05 * jax.random.normal(ks[2], (E, E), dtype=jnp.float32)
    wv = 0.05 * jax.random.normal(ks[3], (E, E), dtype=jnp.float32)
    wo = 0.05 * jax.random.normal(ks[4], (E, E), dtype=jnp.float32)
    bq = 0.01 * jax.random.normal(ks[5], (E,), dtype=jnp.float32)
    bk = 0.01 * jax.random.normal(ks[6], (E,), dtype=jnp.float32)
    bv = 0.01 * jax.random.normal(ks[7], (E,), dtype=jnp.float32)
    bo = 0.01 * jax.random.normal(ks[8], (E,), dtype=jnp.float32)

    ref_out, ref_aw = _reference(x, wq, bq, wk, bk, wv, bv, wo, bo, num_heads=H)

    # fp32 MXU path with an explicit multi-group head axis (G = 2) to exercise
    # the grid/accumulator path; exact softmax -> tight tolerance.
    out, aw = siglip_attention(x, wq, bq, wk, bk, wv, bv, wo, bo, num_heads=H,
                               compute_dtype=jnp.float32, heads_per_block=2)
    out = jax.block_until_ready(out)
    aw = jax.block_until_ready(aw)
    assert out.shape == (B, S, E)
    assert aw.shape == (B, H, S, S)
    assert jnp.allclose(out, ref_out, rtol=2e-3, atol=2e-3)
    assert jnp.allclose(aw, ref_aw, rtol=2e-3, atol=2e-3)

    # Default path: bf16 MXU operands (fp32 accumulation + softmax), head
    # group auto-sized from VMEM capacity.
    out_bf, aw_bf = siglip_attention(x, wq, bq, wk, bk, wv, bv, wo, bo,
                                     num_heads=H)
    out_bf = jax.block_until_ready(out_bf)
    aw_bf = jax.block_until_ready(aw_bf)
    assert jnp.allclose(out_bf, ref_out, rtol=5e-2, atol=5e-2)
    assert jnp.allclose(aw_bf, ref_aw, rtol=5e-2, atol=5e-2)

    # attn_weights skipped: drops the dominant (B,H,S,S) HBM writeback.
    out_only, none_aw = siglip_attention(x, wq, bq, wk, bk, wv, bv, wo, bo,
                                         num_heads=H, return_attn_weights=False)
    out_only = jax.block_until_ready(out_only)
    assert none_aw is None
    assert out_only.shape == (B, S, E)
    assert jnp.allclose(out_only, ref_out, rtol=5e-2, atol=5e-2)

    print("KERNEL_OK")
</pallas_src>

<mosaic_0001>
module attributes {stable_mosaic.version = 11 : i64} {
  func.func @_siglip_attn_kernel(%arg0: i32, %arg1: i32, %arg2: memref<1x8x32xf32, #tpu.memory_space<vmem>>, %arg3: memref<1x32x48xf32, #tpu.memory_space<vmem>>, %arg4: memref<1x1x48xf32, #tpu.memory_space<vmem>>, %arg5: memref<1x16x32xf32, #tpu.memory_space<vmem>>, %arg6: memref<1x32xf32, #tpu.memory_space<vmem>>, %arg7: memref<1x8x32xf32, #tpu.memory_space<vmem>>, %arg8: memref<1x2x8x8xf32, #tpu.memory_space<vmem>>, %arg9: memref<8x32xf32, #tpu.memory_space<vmem>>) attributes {dimension_semantics = [#tpu.dimension_semantics<parallel>, #tpu.dimension_semantics<arbitrary>], iteration_bounds = array<i64: 2, 2>, scalar_prefetch = 0 : i64, scratch_operands = 1 : i64, tpu.core_type = #tpu.core_type<tc>, window_params = [{transform_indices = @transform_0, window_bounds = array<i64: 1, 8, 32>}, {transform_indices = @transform_1, window_bounds = array<i64: 1, 32, 48>}, {transform_indices = @transform_2, window_bounds = array<i64: 1, 1, 48>}, {transform_indices = @transform_3, window_bounds = array<i64: 1, 16, 32>}, {pipeline_mode = #tpu.pipeline_mode<synchronous>, transform_indices = @transform_4, window_bounds = array<i64: 1, 32>}, {transform_indices = @transform_5, window_bounds = array<i64: 1, 8, 32>}, {transform_indices = @transform_6, window_bounds = array<i64: 1, 2, 8, 8>}]} {
    %c0_i32 = arith.constant 0 : i32
    %0 = arith.cmpi eq, %arg1, %c0_i32 : i32
    %1 = arith.extui %0 : i1 to i32
    %c0_i32_0 = arith.constant 0 : i32
    %2 = arith.cmpi ne, %1, %c0_i32_0 : i32
    scf.if %2 {
      %cst_27 = arith.constant 0.000000e+00 : f32
      %48 = vector.broadcast %cst_27 : f32 to vector<8x32xf32>
      %c0_28 = arith.constant 0 : index
      %c0_29 = arith.constant 0 : index
      %49 = vector.load %arg9[%c0_28, %c0_29] : memref<8x32xf32, #tpu.memory_space<vmem>>, vector<8x32xf32>
      tpu.vector_store %arg9[%c0_28, %c0_29], %48 {strides = array<i32>} : memref<8x32xf32, #tpu.memory_space<vmem>>, vector<8x32xf32>,
    } else {
    }
    %c0 = arith.constant 0 : index
    %c0_1 = arith.constant 0 : index
    %c0_2 = arith.constant 0 : index
    %3 = vector.load %arg2[%c0, %c0_1, %c0_2] : memref<1x8x32xf32, #tpu.memory_space<vmem>>, vector<1x8x32xf32>
    %4 = vector.shape_cast %3 : vector<1x8x32xf32> to vector<8x32xf32>
    %c0_3 = arith.constant 0 : index
    %c0_4 = arith.constant 0 : index
    %c0_5 = arith.constant 0 : index
    %5 = vector.load %arg3[%c0_3, %c0_4, %c0_5] : memref<1x32x48xf32, #tpu.memory_space<vmem>>, vector<1x32x48xf32>
    %6 = vector.shape_cast %5 : vector<1x32x48xf32> to vector<32x48xf32>
    %cst = arith.constant dense<0.000000e+00> : vector<8x48xf32>
    %7 = tpu.matmul %4, %6, %cst {dimension_numbers = #tpu.dot_dimension_numbers<[1], [0], [0], [1], [0, 0, 1, 1], [], []>} : vector<8x32xf32>, vector<32x48xf32>, vector<8x48xf32> -> vector<8x48xf32>
    %c0_6 = arith.constant 0 : index
    %c0_7 = arith.constant 0 : index
    %c0_8 = arith.constant 0 : index
    %8 = vector.load %arg4[%c0_6, %c0_7, %c0_8] : memref<1x1x48xf32, #tpu.memory_space<vmem>>, vector<1x1x48xf32>
    %9 = vector.shape_cast %8 : vector<1x1x48xf32> to vector<1x48xf32>
    %10 = vector.broadcast %9 : vector<1x48xf32> to vector<8x48xf32>
    %11 = arith.addf %7, %10 : vector<8x48xf32>
    %12 = vector.extract_strided_slice %11 {offsets = [0, 0], sizes = [8, 16], strides = [1, 1]} : vector<8x48xf32> to vector<8x16xf32>
    %13 = vector.shape_cast %12 : vector<8x16xf32> to vector<8x2x8xf32>
    %14 = tpu.transpose %13, [1, 0, 2] : vector<8x2x8xf32> -> vector<2x8x8xf32>
    %15 = vector.extract_strided_slice %11 {offsets = [0, 16], sizes = [8, 16], strides = [1, 1]} : vector<8x48xf32> to vector<8x16xf32>
    %16 = vector.shape_cast %15 : vector<8x16xf32> to vector<8x2x8xf32>
    %17 = tpu.transpose %16, [1, 0, 2] : vector<8x2x8xf32> -> vector<2x8x8xf32>
    %18 = vector.extract_strided_slice %11 {offsets = [0, 32], sizes = [8, 16], strides = [1, 1]} : vector<8x48xf32> to vector<8x16xf32>
    %19 = vector.shape_cast %18 : vector<8x16xf32> to vector<8x2x8xf32>
    %20 = tpu.transpose %19, [1, 0, 2] : vector<8x2x8xf32> -> vector<2x8x8xf32>
    "tpu.trace_start"() <{level = 10 : i32, message = "hsd,hpd->hsp"}> : () -> ()
    %cst_9 = arith.constant dense<0.000000e+00> : vector<2x8x8xf32>
    %21 = tpu.matmul %14, %17, %cst_9 {dimension_numbers = #tpu.dot_dimension_numbers<[2], [2], [1], [1], [0, 0, 0, 1, 1, 1], [0], [0]>} : vector<2x8x8xf32>, vector<2x8x8xf32>, vector<2x8x8xf32> -> vector<2x8x8xf32>
    "tpu.trace_stop"() : () -> ()
    %cst_10 = arith.constant dense<0xFF800000> : vector<2x8xf32>
    %22 = vector.multi_reduction <maximumf>, %21, %cst_10 [2] : vector<2x8x8xf32> to vector<2x8xf32>
    %23 = vector.shape_cast %22 : vector<2x8xf32> to vector<2x8x1xf32>
    %24 = vector.broadcast %23 : vector<2x8x1xf32> to vector<2x8x8xf32>
    %25 = arith.subf %21, %24 : vector<2x8x8xf32>
    %26 = math.exp %25 : vector<2x8x8xf32>
    %cst_11 = arith.constant dense<0.000000e+00> : vector<2x8xf32>
    %27 = vector.multi_reduction <add>, %26, %cst_11 [2] : vector<2x8x8xf32> to vector<2x8xf32>
    %28 = vector.shape_cast %27 : vector<2x8xf32> to vector<2x8x1xf32>
    %cst_12 = arith.constant 1.000000e+00 : f32
    %29 = vector.broadcast %cst_12 : f32 to vector<2x8x1xf32>
    %30 = arith.divf %29, %28 : vector<2x8x1xf32>
    %31 = vector.broadcast %30 : vector<2x8x1xf32> to vector<2x8x8xf32>
    %32 = arith.mulf %26, %31 : vector<2x8x8xf32>
    %c0_13 = arith.constant 0 : index
    %c0_14 = arith.constant 0 : index
    %c0_15 = arith.constant 0 : index
    %c0_16 = arith.constant 0 : index
    %33 = vector.load %arg8[%c0_13, %c0_14, %c0_15, %c0_16] : memref<1x2x8x8xf32, #tpu.memory_space<vmem>>, vector<1x2x8x8xf32>
    %34 = vector.shape_cast %33 : vector<1x2x8x8xf32> to vector<2x8x8xf32>
    %35 = vector.shape_cast %32 : vector<2x8x8xf32> to vector<1x2x8x8xf32>
    tpu.vector_store %arg8[%c0_13, %c0_14, %c0_15, %c0_16], %35 {strides = array<i32>} : memref<1x2x8x8xf32, #tpu.memory_space<vmem>>, vector<1x2x8x8xf32>,
    "tpu.trace_start"() <{level = 10 : i32, message = "hsp,hpd->hsd"}> : () -> ()
    %cst_17 = arith.constant dense<0.000000e+00> : vector<2x8x8xf32>
    %36 = tpu.matmul %32, %20, %cst_17 {dimension_numbers = #tpu.dot_dimension_numbers<[2], [1], [1], [2], [0, 0, 0, 1, 1, 2], [0], [0]>} : vector<2x8x8xf32>, vector<2x8x8xf32>, vector<2x8x8xf32> -> vector<2x8x8xf32>
    "tpu.trace_stop"() : () -> ()
    %37 = tpu.transpose %36, [1, 0, 2] : vector<2x8x8xf32> -> vector<8x2x8xf32>
    %38 = vector.shape_cast %37 : vector<8x2x8xf32> to vector<8x16xf32>
    %c0_18 = arith.constant 0 : index
    %c0_19 = arith.constant 0 : index
    %39 = vector.load %arg9[%c0_18, %c0_19] : memref<8x32xf32, #tpu.memory_space<vmem>>, vector<8x32xf32>
    %c0_20 = arith.constant 0 : index
    %c0_21 = arith.constant 0 : index
    %c0_22 = arith.constant 0 : index
    %40 = vector.load %arg5[%c0_20, %c0_21, %c0_22] : memref<1x16x32xf32, #tpu.memory_space<vmem>>, vector<1x16x32xf32>
    %41 = vector.shape_cast %40 : vector<1x16x32xf32> to vector<16x32xf32>
    %cst_23 = arith.constant dense<0.000000e+00> : vector<8x32xf32>
    %42 = tpu.matmul %38, %41, %cst_23 {dimension_numbers = #tpu.dot_dimension_numbers<[1], [0], [0], [1], [0, 0, 1, 1], [], []>} : vector<8x16xf32>, vector<16x32xf32>, vector<8x32xf32> -> vector<8x32xf32>
    %43 = arith.addf %39, %42 : vector<8x32xf32>
    %c0_24 = arith.constant 0 : index
    %c0_25 = arith.constant 0 : index
    %44 = vector.load %arg9[%c0_24, %c0_25] : memref<8x32xf32, #tpu.memory_space<vmem>>, vector<8x32xf32>
    tpu.vector_store %arg9[%c0_24, %c0_25], %43 {strides = array<i32>} : memref<8x32xf32, #tpu.memory_space<vmem>>, vector<8x32xf32>,
    %c1_i32 = arith.constant 1 : i32
    %45 = arith.cmpi eq, %arg1, %c1_i32 : i32
    %46 = arith.extui %45 : i1 to i32
    %c0_i32_26 = arith.constant 0 : i32
    %47 = arith.cmpi ne, %46, %c0_i32_26 : i32
    scf.if %47 {
      %c0_27 = arith.constant 0 : index
      %c0_28 = arith.constant 0 : index
      %48 = vector.load %arg9[%c0_27, %c0_28] : memref<8x32xf32, #tpu.memory_space<vmem>>, vector<8x32xf32>
      %c0_29 = arith.constant 0 : index
      %c0_30 = arith.constant 0 : index
      %49 = vector.load %arg6[%c0_29, %c0_30] : memref<1x32xf32, #tpu.memory_space<vmem>>, vector<1x32xf32>
      %50 = vector.broadcast %49 : vector<1x32xf32> to vector<8x32xf32>
      %51 = arith.addf %48, %50 : vector<8x32xf32>
      %c0_31 = arith.constant 0 : index
      %c0_32 = arith.constant 0 : index
      %c0_33 = arith.constant 0 : index
      %52 = vector.load %arg7[%c0_31, %c0_32, %c0_33] : memref<1x8x32xf32, #tpu.memory_space<vmem>>, vector<1x8x32xf32>
      %53 = vector.shape_cast %52 : vector<1x8x32xf32> to vector<8x32xf32>
      %54 = vector.shape_cast %51 : vector<8x32xf32> to vector<1x8x32xf32>
      tpu.vector_store %arg7[%c0_31, %c0_32, %c0_33], %54 {strides = array<i32>} : memref<1x8x32xf32, #tpu.memory_space<vmem>>, vector<1x8x32xf32>,
    } else {
    }
    return
  }
  func.func @transform_0(%arg0: i32, %arg1: i32) -> (i32, i32, i32) {
    %c0_i32 = arith.constant 0 : i32
    %c0_i32_0 = arith.constant 0 : i32
    %c0_i32_1 = arith.constant 0 : i32
    return %arg0, %c0_i32, %c0_i32_0 : i32, i32, i32
  }
  func.func @transform_1(%arg0: i32, %arg1: i32) -> (i32, i32, i32) {
    %c0_i32 = arith.constant 0 : i32
    %c0_i32_0 = arith.constant 0 : i32
    %c0_i32_1 = arith.constant 0 : i32
    return %arg1, %c0_i32, %c0_i32_0 : i32, i32, i32
  }
  func.func @transform_2(%arg0: i32, %arg1: i32) -> (i32, i32, i32) {
    %c0_i32 = arith.constant 0 : i32
    %c0_i32_0 = arith.constant 0 : i32
    %c0_i32_1 = arith.constant 0 : i32
    return %arg1, %c0_i32, %c0_i32_0 : i32, i32, i32
  }
  func.func @transform_3(%arg0: i32, %arg1: i32) -> (i32, i32, i32) {
    %c0_i32 = arith.constant 0 : i32
    %c0_i32_0 = arith.constant 0 : i32
    %c0_i32_1 = arith.constant 0 : i32
    return %arg1, %c0_i32, %c0_i32_0 : i32, i32, i32
  }
  func.func @transform_4(%arg0: i32, %arg1: i32) -> (i32, i32) {
    %c0_i32 = arith.constant 0 : i32
    %c0_i32_0 = arith.constant 0 : i32
    %c0_i32_1 = arith.constant 0 : i32
    return %c0_i32, %c0_i32_0 : i32, i32
  }
  func.func @transform_5(%arg0: i32, %arg1: i32) -> (i32, i32, i32) {
    %c0_i32 = arith.constant 0 : i32
    %c0_i32_0 = arith.constant 0 : i32
    %c0_i32_1 = arith.constant 0 : i32
    return %arg0, %c0_i32, %c0_i32_0 : i32, i32, i32
  }
  func.func @transform_6(%arg0: i32, %arg1: i32) -> (i32, i32, i32, i32) {
    %c0_i32 = arith.constant 0 : i32
    %c0_i32_0 = arith.constant 0 : i32
    %c0_i32_1 = arith.constant 0 : i32
    return %arg0, %arg1, %c0_i32, %c0_i32_0 : i32, i32, i32, i32
  }
}

</mosaic_0001>

<llo_original>
// kernel: tpu_custom_call.1
$region0: #{tpu_custom_call.1}
  #allocation0 [shape = 'u32[]', space=smem, size = 0x4, offset = 0x4, fixed_abs, tag = 'smem constant byte address 0x4 - core index']
  #allocation1 [shape = 'u32[72,128]{1,0:T(1,128)}', space=vmem, size = 0x9000, scoped, tag = 'internal scratch']
  #allocation2 [shape = 'f32[8,32]{1,0:T(8,128)}', space=vmem, size = 0x1000, scoped, tag = 'scratch operand']
  %s0 = inlined_call_operand.hbm [shape: f32[2,8,32], index: 0, kind: input, shape index: {}]
  %s1 = inlined_call_operand.hbm [shape: f32[2,32,48], index: 1, kind: input, shape index: {}]
  %s2 = inlined_call_operand.hbm [shape: f32[2,1,48], index: 2, kind: input, shape index: {}]
  %s3 = inlined_call_operand.hbm [shape: f32[2,16,32], index: 3, kind: input, shape index: {}]
  %s4 = inlined_call_operand.vmem [shape: f32[1,32], index: 4, kind: input, shape index: {}]
  %s5 = inlined_call_operand.hbm [shape: f32[2,8,32], index: 5, kind: output, shape index: {0}]
  %s6 = inlined_call_operand.hbm [shape: f32[2,4,8,8], index: 6, kind: output, shape index: {1}]
  %7 = xla_tuple %s5, %s6
  %s8 = sld [smem:[#allocation0]]
  $region85: #{tpu_custom_call.1} parent=0
    _
  %s10 = ssub.s32 1, %s8
  %s11 = scalar_select 0, %s10, %s8
  $region1: #{tpu_custom_call.1} parent=0
    #allocation3 [shape = 'u8[8192]{0}', space=vmem, size = 0x2000, scoped, tag = 'input window, operand 0']
    #allocation4 [shape = 's32[2]{0}', space=sflag, size = 0x8, scoped, tag = 'scoped memory for tpu_custom_call.1']
    #allocation5 [shape = 's32[2]{0}', space=sflag, size = 0x8, scoped, tag = 'scoped memory for tpu_custom_call.1']
    #allocation6 [shape = 'u8[32768]{0}', space=vmem, size = 0x8000, scoped, tag = 'input window, operand 1']
    #allocation7 [shape = 's32[2]{0}', space=sflag, size = 0x8, scoped, tag = 'scoped memory for tpu_custom_call.1']
    #allocation8 [shape = 'u8[1024]{0}', space=vmem, size = 0x400, scoped, tag = 'input window, operand 2']
    #allocation9 [shape = 'u8[16384]{0}', space=vmem, size = 0x4000, scoped, tag = 'input window, operand 3']
    #allocation10 [shape = 's32[2]{0}', space=sflag, size = 0x8, scoped, tag = 'scoped memory for tpu_custom_call.1']
    #allocation11 [shape = 'u8[8192]{0}', space=vmem, size = 0x2000, scoped, tag = 'output window, operand 0']
    #allocation12 [shape = 'u8[16384]{0}', space=vmem, size = 0x4000, scoped, tag = 'output window, operand 1']
    #allocation13 [shape = 's32[2]{0}', space=sflag, size = 0x8, scoped, tag = 'scoped memory for tpu_custom_call.1']
    %12 = vsyncpa [#allocation4], 0
    %s13 = scalar_lea.sflag [#allocation4], 1
    %14 = vsyncpa %s13, 0
    %15 = vsyncpa [#allocation7], 0
    %s16 = scalar_lea.sflag [#allocation7], 1
    %17 = vsyncpa %s16, 0
    %18 = vsyncpa [#allocation10], 0
    %s19 = scalar_lea.sflag [#allocation10], 1
    %20 = vsyncpa %s19, 0
    %21 = vsyncpa [#allocation5], 0
    %s22 = scalar_lea.sflag [#allocation5], 1
    %23 = vsyncpa %s22, 0
    %24 = vsyncpa [#allocation13], 0
    %s25 = scalar_lea.sflag [#allocation13], 1
    %26 = vsyncpa %s25, 0
    loop: start=0, step=1, limit=6
    $region2: #{tpu_custom_call.1} parent=1 // loop_pre_header
      _
    $region3: #{tpu_custom_call.1} parent=1 // loop_header
      %s28 = sphi 0, %s32
      %p29 = scmp.ge.s32.totalorder %s28, 6
      %s35 = sphi 0, %s47
      %s36 = sphi 0, %s43
      %s37 = sphi 0, %s35
      %s38 = sphi 0, %s36
      %s39 = sphi 0, %s37
      %s40 = sphi 0, %s38
      %s50 = sphi 0, %s52
      %s53 = sphi 0, %s50
      %s54 = sphi 0, %s53
      %s70 = sphi 0, %s54
      %s76 = sphi 0, %s78
      %s79 = sphi 0, %s76
      %s80 = sphi 0, %s79
      %s96 = sphi 0, %s80
      %s102 = sphi 0, %s104
      %s105 = sphi 0, %s102
      %s106 = sphi 0, %s105
      %s122 = sphi 0, %s106
      %s128 = sphi 0, %s130
      %s131 = sphi 0, %s128
      %s132 = sphi 0, %s131
      %s148 = sphi 0, %s132
      %s152 = sphi 0, %s152
      %s154 = sphi 0, %s152
      %s155 = sphi 0, %s154
      %s169 = sphi 0, %s155
      %s175 = sphi 0, %s177
      %s178 = sphi 0, %s175
      %s179 = sphi 0, %s178
      %s195 = sphi 0, %s179
      %s203 = sphi 0, %s205
      %s206 = sphi 0, %s203
      %s207 = sphi 0, %s206
      %s223 = sphi 0, %s207
    $region4: #{tpu_custom_call.1} parent=1 // loop_header_branch
      %31 = sbr.rel (%p29) target = $region8
    $region5: #{tpu_custom_call.1} parent=1 // loop_body
      %s33 = ssub.s32 %s28, 1
      %s34 = ssub.s32 %s28, 2
      %s41 = sadd.s32 1, %s36
      %p42 = scmp.ge.s32.totalorder %s41, 2
      %s43 = scalar_select %p42, 0, %s41
      %s44 = sadd.s32 1, %s35
      %s45 = scalar_select %p42, %s44, %s35
      %p46 = scmp.ge.s32.totalorder %s45, 2
      %s47 = scalar_select %p46, 0, %s45
      %s48 = ssub.s32 %s35, %s47
      %p49 = scmp.eq.s32.totalorder %s48, 0
      %s51 = sadd.s32 %s50, 1
      %s52 = scalar_select %p49, %s50, %s51
      %p55 = pneg %p49
      %p56 = scmp.eq.s32.totalorder %s28, 3
      %p57 = por %p55, %p56
      %p58 = scmp.ne.s32.totalorder %s50, %s53
      %p59 = scmp.eq.s32.totalorder %s28, 0
      %p60 = por %p58, %p59
      %p61 = scmp.ne.s32.totalorder %s50, %s53
      %p62 = scmp.eq.s32.totalorder %s33, 3
      %p63 = por %p61, %p62
      %p64 = scmp.ne.s32.totalorder %s53, %s54
      %p65 = scmp.eq.s32.totalorder %s33, 0
      %p66 = por %p64, %p65
      %p67 = scmp.ne.s32.totalorder %s53, %s54
      %p68 = scmp.eq.s32.totalorder %s34, 3
      %p69 = por %p67, %p68
      %p71 = scmp.ne.s32.totalorder %s54, %s70
      %p72 = scmp.eq.s32.totalorder %s34, 0
      %p73 = por %p71, %p72
      %s74 = ssub.s32 %s36, %s43
      %p75 = scmp.eq.s32.totalorder %s74, 0
      %s77 = sadd.s32 %s76, 1
      %s78 = scalar_select %p75, %s76, %s77
      %p81 = pneg %p75
      %p82 = scmp.eq.s32.totalorder %s28, 3
      %p83 = por %p81, %p82
      %p84 = scmp.ne.s32.totalorder %s76, %s79
      %p85 = scmp.eq.s32.totalorder %s28, 0
      %p86 = por %p84, %p85
      %p87 = scmp.ne.s32.totalorder %s76, %s79
      %p88 = scmp.eq.s32.totalorder %s33, 3
      %p89 = por %p87, %p88
      %p90 = scmp.ne.s32.totalorder %s79, %s80
      %p91 = scmp.eq.s32.totalorder %s33, 0
      %p92 = por %p90, %p91
      %p93 = scmp.ne.s32.totalorder %s79, %s80
      %p94 = scmp.eq.s32.totalorder %s34, 3
      %p95 = por %p93, %p94
      %p97 = scmp.ne.s32.totalorder %s80, %s96
      %p98 = scmp.eq.s32.totalorder %s34, 0
      %p99 = por %p97, %p98
      %s100 = ssub.s32 %s36, %s43
      %p101 = scmp.eq.s32.totalorder %s100, 0
      %s103 = sadd.s32 %s102, 1
      %s104 = scalar_select %p101, %s102, %s103
      %p107 = pneg %p101
      %p108 = scmp.eq.s32.totalorder %s28, 3
      %p109 = por %p107, %p108
      %p110 = scmp.ne.s32.totalorder %s102, %s105
      %p111 = scmp.eq.s32.totalorder %s28, 0
      %p112 = por %p110, %p111
      %p113 = scmp.ne.s32.totalorder %s102, %s105
      %p114 = scmp.eq.s32.totalorder %s33, 3
      %p115 = por %p113, %p114
      %p116 = scmp.ne.s32.totalorder %s105, %s106
      %p117 = scmp.eq.s32.totalorder %s33, 0
      %p118 = por %p116, %p117
      %p119 = scmp.ne.s32.totalorder %s105, %s106
      %p120 = scmp.eq.s32.totalorder %s34, 3
      %p121 = por %p119, %p120
      %p123 = scmp.ne.s32.totalorder %s106, %s122
      %p124 = scmp.eq.s32.totalorder %s34, 0
      %p125 = por %p123, %p124
      %s126 = ssub.s32 %s36, %s43
      %p127 = scmp.eq.s32.totalorder %s126, 0
      %s129 = sadd.s32 %s128, 1
      %s130 = scalar_select %p127, %s128, %s129
      %p133 = pneg %p127
      %p134 = scmp.eq.s32.totalorder %s28, 3
      %p135 = por %p133, %p134
      %p136 = scmp.ne.s32.totalorder %s128, %s131
      %p137 = scmp.eq.s32.totalorder %s28, 0
      %p138 = por %p136, %p137
      %p139 = scmp.ne.s32.totalorder %s128, %s131
      %p140 = scmp.eq.s32.totalorder %s33, 3
      %p141 = por %p139, %p140
      %p142 = scmp.ne.s32.totalorder %s131, %s132
      %p143 = scmp.eq.s32.totalorder %s33, 0
      %p144 = por %p142, %p143
      %p145 = scmp.ne.s32.totalorder %s131, %s132
      %p146 = scmp.eq.s32.totalorder %s34, 3
      %p147 = por %p145, %p146
      %p149 = scmp.ne.s32.totalorder %s132, %s148
      %p150 = scmp.eq.s32.totalorder %s34, 0
      %p151 = por %p149, %p150
      %s153 = sadd.s32 %s152, 1
      %p156 = scmp.eq.s32.totalorder %s28, 3
      %p157 = scmp.ne.s32.totalorder %s152, %s154
      %p158 = scmp.eq.s32.totalorder %s28, 0
      %p159 = por %p157, %p158
      %p160 = scmp.ne.s32.totalorder %s152, %s154
      %p161 = scmp.eq.s32.totalorder %s33, 3
      %p162 = por %p160, %p161
      %p163 = scmp.ne.s32.totalorder %s154, %s155
      %p164 = scmp.eq.s32.totalorder %s33, 0
      %p165 = por %p163, %p164
      %p166 = scmp.ne.s32.totalorder %s154, %s155
      %p167 = scmp.eq.s32.totalorder %s34, 3
      %p168 = por %p166, %p167
      %p170 = scmp.ne.s32.totalorder %s155, %s169
      %p171 = scmp.eq.s32.totalorder %s34, 0
      %p172 = por %p170, %p171
      %s173 = ssub.s32 %s35, %s47
      %p174 = scmp.eq.s32.totalorder %s173, 0
      %s176 = sadd.s32 %s175, 1
      %s177 = scalar_select %p174, %s175, %s176
      %p180 = pneg %p174
      %p181 = scmp.eq.s32.totalorder %s28, 3
      %p182 = por %p180, %p181
      %p183 = scmp.ne.s32.totalorder %s175, %s178
      %p184 = scmp.eq.s32.totalorder %s28, 0
      %p185 = por %p183, %p184
      %p186 = scmp.ne.s32.totalorder %s175, %s178
      %p187 = scmp.eq.s32.totalorder %s33, 3
      %p188 = por %p186, %p187
      %p189 = scmp.ne.s32.totalorder %s178, %s179
      %p190 = scmp.eq.s32.totalorder %s33, 0
      %p191 = por %p189, %p190
      %p192 = scmp.ne.s32.totalorder %s178, %s179
      %p193 = scmp.eq.s32.totalorder %s34, 3
      %p194 = por %p192, %p193
      %p196 = scmp.ne.s32.totalorder %s179, %s195
      %p197 = scmp.eq.s32.totalorder %s34, 0
      %p198 = por %p196, %p197
      %s199 = ssub.s32 %s35, %s47
      %s200 = ssub.s32 %s36, %s43
      %s201 = sor.u32 %s199, %s200
      %p202 = scmp.eq.s32.totalorder %s201, 0
      %s204 = sadd.s32 %s203, 1
      %s205 = scalar_select %p202, %s203, %s204
      %p208 = pneg %p202
      %p209 = scmp.eq.s32.totalorder %s28, 3
      %p210 = por %p208, %p209
      %p211 = scmp.ne.s32.totalorder %s203, %s206
      %p212 = scmp.eq.s32.totalorder %s28, 0
      %p213 = por %p211, %p212
      %p214 = scmp.ne.s32.totalorder %s203, %s206
      %p215 = scmp.eq.s32.totalorder %s33, 3
      %p216 = por %p214, %p215
      %p217 = scmp.ne.s32.totalorder %s206, %s207
      %p218 = scmp.eq.s32.totalorder %s33, 0
      %p219 = por %p217, %p218
      %p220 = scmp.ne.s32.totalorder %s206, %s207
      %p221 = scmp.eq.s32.totalorder %s34, 3
      %p222 = por %p220, %p221
      %p224 = scmp.ne.s32.totalorder %s207, %s223
      %p225 = scmp.eq.s32.totalorder %s34, 0
      %p226 = por %p224, %p225
      %p227 = scmp.le.s32.totalorder 1, %s28
      %p228 = scmp.lt.s32.totalorder %s28, 5
      %p229 = pnand %p227, %p228
      %p230 = pneg %p229
      // Predicated region
      $region9: #{tpu_custom_call.1} parent=5 // pred_check
        _
      $region10: #{tpu_custom_call.1} parent=5 // pred_check_branch
        %232 = sbr.rel (%p229) target = $region12
      $region11: #{tpu_custom_call.1} parent=5 // pred_region
        %s233 = ssub.s32 %s28, 1
        // Predicated region
        $region13: #{tpu_custom_call.1} parent=11 // pred_check
          %p234 = pneg %p165
        $region14: #{tpu_custom_call.1} parent=11 // pred_check_branch
          %236 = sbr.rel (%p234) target = $region16
        $region15: #{tpu_custom_call.1} parent=11 // pred_region
          _
        $region16: #{tpu_custom_call.1} parent=11 // pred_fallthru
          _
      $region12: #{tpu_custom_call.1} parent=5 // pred_fallthru
        _
      %p237 = scmp.lt.s32.totalorder %s28, 4
      // Predicated region
      $region17: #{tpu_custom_call.1} parent=5 // pred_check
        %p238 = pneg %p237
      $region18: #{tpu_custom_call.1} parent=5 // pred_check_branch
        %240 = sbr.rel (%p238) target = $region20
      $region19: #{tpu_custom_call.1} parent=5 // pred_region
        // Predicated region
        $region21: #{tpu_custom_call.1} parent=19 // pred_check
          %p241 = pneg %p60
        $region22: #{tpu_custom_call.1} parent=19 // pred_check_branch
          %243 = sbr.rel (%p241) target = $region24
        $region23: #{tpu_custom_call.1} parent=19 // pred_region
          %s244 = sand.u32 %s50, 1
          %s245 = scalar_lea.sflag [#allocation4], %s244
          %s246 = sand.u32 %s50, 1
          %s247 = smul.addr %s246, 8
          %s248 = scalar_lea.vmem [#allocation3], %s247
          %250 = vsyncadd %s245, 0
          %s251 = smul.addr %s35, 8
          %s252 = scalar_lea.hbm %s0, %s251
          %s254 = sshll.u32 %s252, 4
          %s255 = int_to_ptr.hbm [resolvable:$true] %s254
          %s256 = sshll.u32 %s248, 4
          %s257 = int_to_ptr.vmem [resolvable:$true] %s256
          %259 = dma.hbm_to_vmem [thread:$0]  %s255, 128, %s257, %s245
        $region24: #{tpu_custom_call.1} parent=19 // pred_fallthru
          _
        // Predicated region
        $region25: #{tpu_custom_call.1} parent=19 // pred_check
          %p260 = pneg %p86
        $region26: #{tpu_custom_call.1} parent=19 // pred_check_branch
          %262 = sbr.rel (%p260) target = $region28
        $region27: #{tpu_custom_call.1} parent=19 // pred_region
          %s263 = sand.u32 %s28, 1
          %s264 = scalar_lea.sflag [#allocation7], %s263
          %s265 = sand.u32 %s76, 1
          %s266 = smul.addr %s265, 32
          %s267 = scalar_lea.vmem [#allocation6], %s266
          %269 = vsyncadd %s264, 0
          %s270 = smul.addr %s36, 4
          %s271 = smul.addr %s270, 8
          %s272 = scalar_lea.hbm %s1, %s271
          %s273 = sshll.u32 %s272, 4
          %s274 = int_to_ptr.hbm [resolvable:$true] %s273
          %s275 = sshll.u32 %s267, 4
          %s276 = int_to_ptr.vmem [resolvable:$true] %s275
          %281 = dma.hbm_to_vmem [thread:$0]  %s274, 512, %s276, %s264, 128, 128, 8
        $region28: #{tpu_custom_call.1} parent=19 // pred_fallthru
          _
        // Predicated region
        $region29: #{tpu_custom_call.1} parent=19 // pred_check
          %p282 = pneg %p112
        $region30: #{tpu_custom_call.1} parent=19 // pred_check_branch
          %284 = sbr.rel (%p282) target = $region32
        $region31: #{tpu_custom_call.1} parent=19 // pred_region
          %s285 = sand.u32 %s28, 1
          %s286 = scalar_lea.sflag [#allocation7], %s285
          %s287 = sand.u32 %s102, 1
          %s288 = scalar_lea.vmem [#allocation8], %s287
          %290 = vsyncadd %s286, 0
          %s291 = scalar_lea.hbm %s2, %s36
          %s293 = sshll.u32 %s291, 4
          %s294 = int_to_ptr.hbm [resolvable:$true] %s293
          %s295 = sshll.u32 %s288, 4
          %s296 = int_to_ptr.vmem [resolvable:$true] %s295
          %298 = dma.hbm_to_vmem [thread:$0]  %s294, 16, %s296, %s286
        $region32: #{tpu_custom_call.1} parent=19 // pred_fallthru
          _
        // Predicated region
        $region33: #{tpu_custom_call.1} parent=19 // pred_check
          %p299 = pneg %p138
        $region34: #{tpu_custom_call.1} parent=19 // pred_check_branch
          %301 = sbr.rel (%p299) target = $region36
        $region35: #{tpu_custom_call.1} parent=19 // pred_region
          %s302 = sand.u32 %s128, 1
          %s303 = scalar_lea.sflag [#allocation10], %s302
          %s304 = sand.u32 %s128, 1
          %s305 = smul.addr %s304, 16
          %s306 = scalar_lea.vmem [#allocation9], %s305
          %308 = vsyncadd %s303, 0
          %s309 = smul.addr %s36, 2
          %s310 = smul.addr %s309, 8
          %s311 = scalar_lea.hbm %s3, %s310
          %s312 = sshll.u32 %s311, 4
          %s313 = int_to_ptr.hbm [resolvable:$true] %s312
          %s314 = sshll.u32 %s306, 4
          %s315 = int_to_ptr.vmem [resolvable:$true] %s314
          %320 = dma.hbm_to_vmem [thread:$0]  %s313, 256, %s315, %s303, 128, 128, 8
        $region36: #{tpu_custom_call.1} parent=19 // pred_fallthru
          _
      $region20: #{tpu_custom_call.1} parent=5 // pred_fallthru
        _
      %p321 = scmp.le.s32.totalorder 1, %s28
      %p322 = scmp.lt.s32.totalorder %s28, 5
      %p323 = pnand %p321, %p322
      %p324 = pneg %p323
      // Predicated region
      $region37: #{tpu_custom_call.1} parent=5 // pred_check
        _
      $region38: #{tpu_custom_call.1} parent=5 // pred_check_branch
        %326 = sbr.rel (%p323) target = $region40
      $region39: #{tpu_custom_call.1} parent=5 // pred_region
        %s327 = ssub.s32 %s28, 1
        %s328 = sand.u32 %s53, 1
        %s329 = scalar_lea.sflag [#allocation4], %s328
        %s330 = sand.u32 %s53, 1
        %s331 = smul.addr %s330, 8
        %s332 = scalar_lea.vmem [#allocation3], %s331
        // Predicated region
        $region41: #{tpu_custom_call.1} parent=39 // pred_check
          %p333 = pneg %p66
        $region42: #{tpu_custom_call.1} parent=39 // pred_check_branch
          %335 = sbr.rel (%p333) target = $region44
        $region43: #{tpu_custom_call.1} parent=39 // pred_region
          %337 = dma.done %s329, 128
        $region44: #{tpu_custom_call.1} parent=39 // pred_fallthru
          _
        %s338 = sand.u32 %s33, 1
        %s339 = scalar_lea.sflag [#allocation7], %s338
        %s340 = sand.u32 %s79, 1
        %s341 = smul.addr %s340, 32
        %s342 = scalar_lea.vmem [#allocation6], %s341
        // Predicated region
        $region45: #{tpu_custom_call.1} parent=39 // pred_check
          %p343 = pneg %p92
        $region46: #{tpu_custom_call.1} parent=39 // pred_check_branch
          %345 = sbr.rel (%p343) target = $region48
        $region47: #{tpu_custom_call.1} parent=39 // pred_region
          %347 = dma.done %s339, 512
        $region48: #{tpu_custom_call.1} parent=39 // pred_fallthru
          _
        %s348 = sand.u32 %s33, 1
        %s349 = scalar_lea.sflag [#allocation7], %s348
        %s350 = sand.u32 %s105, 1
        %s351 = scalar_lea.vmem [#allocation8], %s350
        // Predicated region
        $region49: #{tpu_custom_call.1} parent=39 // pred_check
          %p352 = pneg %p118
        $region50: #{tpu_custom_call.1} parent=39 // pred_check_branch
          %354 = sbr.rel (%p352) target = $region52
        $region51: #{tpu_custom_call.1} parent=39 // pred_region
          %356 = dma.done %s349, 16
        $region52: #{tpu_custom_call.1} parent=39 // pred_fallthru
          _
        %s357 = sand.u32 %s131, 1
        %s358 = scalar_lea.sflag [#allocation10], %s357
        %s359 = sand.u32 %s131, 1
        %s360 = smul.addr %s359, 16
        %s361 = scalar_lea.vmem [#allocation9], %s360
        // Predicated region
        $region53: #{tpu_custom_call.1} parent=39 // pred_check
          %p362 = pneg %p144
        $region54: #{tpu_custom_call.1} parent=39 // pred_check_branch
          %364 = sbr.rel (%p362) target = $region56
        $region55: #{tpu_custom_call.1} parent=39 // pred_region
          %366 = dma.done %s358, 256
        $region56: #{tpu_custom_call.1} parent=39 // pred_fallthru
          _
        %s367 = sand.u32 %s53, 1
        %s368 = scalar_lea.sflag [#allocation4], %s367
        %s369 = sand.u32 %s53, 1
        %s370 = smul.addr %s369, 8
        %s371 = scalar_lea.vmem [#allocation3], %s370
        %p372 = pneg %p66
        %p373 = pneg %p63
        %s374 = sand.u32 %s33, 1
        %s375 = scalar_lea.sflag [#allocation7], %s374
        %s376 = sand.u32 %s79, 1
        %s377 = smul.addr %s376, 32
        %s378 = scalar_lea.vmem [#allocation6], %s377
        %p379 = pneg %p92
        %p380 = pneg %p89
        %s381 = sand.u32 %s33, 1
        %s382 = scalar_lea.sflag [#allocation7], %s381
        %s383 = sand.u32 %s105, 1
        %s384 = scalar_lea.vmem [#allocation8], %s383
        %p385 = pneg %p118
        %p386 = pneg %p115
        %s387 = sand.u32 %s131, 1
        %s388 = scalar_lea.sflag [#allocation10], %s387
        %s389 = sand.u32 %s131, 1
        %s390 = smul.addr %s389, 16
        %s391 = scalar_lea.vmem [#allocation9], %s390
        %p392 = pneg %p144
        %p393 = pneg %p141
        %p394 = pneg %p165
        %p395 = pneg %p162
        %p396 = pneg %p191
        %p397 = pneg %p188
        %s398 = sand.u32 %s178, 1
        %s399 = scalar_lea.sflag [#allocation5], %s398
        %s400 = sand.u32 %s178, 1
        %s401 = smul.addr %s400, 8
        %s402 = scalar_lea.vmem [#allocation11], %s401
        %p403 = pneg %p219
        %p404 = pneg %p216
        %s405 = sand.u32 %s206, 1
        %s406 = scalar_lea.sflag [#allocation13], %s405
        %s407 = sand.u32 %s206, 1
        %s408 = smul.addr %s407, 16
        %s409 = scalar_lea.vmem [#allocation12], %s408
        %s410 = smul.u32 2, %s38
        %p411 = scmp.eq.s32.totalorder %s38, 0
        // Predicated region
        $region57: #{tpu_custom_call.1} parent=39 // pred_check
          %p412 = pneg %p411
        $region58: #{tpu_custom_call.1} parent=39 // pred_check_branch
          %414 = sbr.rel (%p412) target = $region60
        $region59: #{tpu_custom_call.1} parent=39 // pred_region
          %vm415 = vcmask 261120
          %416 = vst.msk [vmem:[#allocation2] sm:$0xff] %vm415, 0.0
        $region60: #{tpu_custom_call.1} parent=39 // pred_fallthru
          _
        %v417 = vld [vmem:[%s332] sm:$0xff]
        %v418 = vld [vmem:[%s342] sm:$0xff]
        %v419 = vld [vmem:[%s342 + $0x8] sm:$0xff]
        %v420 = vld [vmem:[%s342 + $0x10] sm:$0xff]
        %v421 = vld [vmem:[%s342 + $0x18] sm:$0xff]
        %v422 = vld [vmem:[%s351] sm:$0x1]
        %v424 = vperm.slane %v422, 0
        %vm426 = vcmask 261120
        %v428 = vsel %vm426, %v417, 0
        %430 = vmatpush.msra.mxu0 0.0
        %431 = vmatpush.msra.mxu0 0.0
        %432 = vmatpush.msra.mxu0 0.0
        %433 = vmatpush.msra.mxu0 0.0
        %434 = vmatpush.msra.mxu0 0.0
        %435 = vmatpush.msra.mxu0 0.0
        %436 = vmatpush.msra.mxu0 0.0
        %437 = vmatpush.msra.mxu0 0.0
        %438 = vmatpush.msra.mxu0 0.0
        %439 = vmatpush.msra.mxu0 0.0
        %440 = vmatpush.msra.mxu0 0.0
        %441 = vmatpush.msra.mxu0 0.0
        %442 = vmatpush.msra.mxu0 %v421
        %443 = vmatpush.msra.mxu0 %v420
        %444 = vmatpush.msra.mxu0 %v419
        %445 = vmatpush.msra.mxu0 %v418
        %446 = vmatmul.f32.gmra.mxu0 %v428
        %v447 = vpop.f32.mrf.mxu0
        %v448 = vadd.f32 %v424, %v447
        %449 = vdwg.mxu0
        %451 = vrot.lane.b32.xlu0 %v448, 120
        %v452 = vpop.permute.xlu0 %451
        %v454 = vrot.slane %v448, 4
        %vm455 = vcmask 1047556
        %v456 = vsel %vm455, 0.0, %v454
        %v458 = vunpack.c.l.s4 1983009808
        %v459 = vunpack.c.0.s8 %v458
        %v460 = vperm.slane %v448, %v459
        %v462 = vunpack.c.l.s4 1983009808
        %v463 = vunpack.c.0.s8 %v462
        %v464 = vperm.slane %v456, %v463
        %v465 = vrot.slane %v452, 4
        %v466 = vsel %vm455, 0.0, %v465
        %v468 = vunpack.c.l.s4 1983009808
        %v469 = vunpack.c.0.s8 %v468
        %v470 = vperm.slane %v452, %v469
        %v472 = vunpack.c.l.s4 1983009808
        %v473 = vunpack.c.0.s8 %v472
        %v474 = vperm.slane %v466, %v473
        %v475 = vrot.slane %v470, 4
        %v476 = vsel %vm455, %v475, %v460
        %v477 = vrot.slane %v460, 4
        %v478 = vsel %vm455, %v470, %v477
        %v480 = vunpack.c.l.s4 1934713408
        %v481 = vunpack.c.0.s8 %v480
        %v482 = vperm.slane %v476, %v481
        %v484 = vunpack.c.l.s4 1934713408
        %v485 = vunpack.c.0.s8 %v484
        %v486 = vperm.slane %v478, %v485
        %v487 = vrot.slane %v474, 4
        %v488 = vsel %vm455, %v487, %v464
        %v489 = vrot.slane %v464, 4
        %v490 = vsel %vm455, %v474, %v489
        %v492 = vunpack.c.l.s4 1934713408
        %v493 = vunpack.c.0.s8 %v492
        %v494 = vperm.slane %v488, %v493
        %v496 = vunpack.c.l.s4 1934713408
        %v497 = vunpack.c.0.s8 %v496
        %v498 = vperm.slane %v490, %v497
        %v499 = vrot.slane %v482, 4
        %v500 = vsel %vm455, 0.0, %v499
        %v501 = vrot.slane %v486, 4
        %v502 = vsel %vm455, 0.0, %v501
        %v503 = vrot.slane %v494, 4
        %v504 = vsel %vm455, 0.0, %v503
        %v505 = vrot.slane %v498, 4
        %v506 = vsel %vm455, 0.0, %v505
        %v507 = vsel %vm455, %v501, %v482
        %v509 = vunpack.c.l.s4 1983009808
        %v510 = vunpack.c.0.s8 %v509
        %v511 = vperm.slane %v507, %v510
        %v512 = vrot.slane %v502, 4
        %v513 = vsel %vm455, %v512, %v500
        %v515 = vunpack.c.l.s4 1983009808
        %v516 = vunpack.c.0.s8 %v515
        %v517 = vperm.slane %v513, %v516
        %v518 = vsel %vm455, %v505, %v494
        %v520 = vunpack.c.l.s4 1983009808
        %v521 = vunpack.c.0.s8 %v520
        %v522 = vperm.slane %v518, %v521
        %v523 = vrot.slane %v506, 4
        %v524 = vsel %vm455, %v523, %v504
        %v526 = vunpack.c.l.s4 1983009808
        %v527 = vunpack.c.0.s8 %v526
        %v528 = vperm.slane %v524, %v527
        %v529 = vrot.slane %v517, 4
        %v530 = vsel %vm455, %v529, %v511
        %v532 = vunpack.c.l.s4 1934713408
        %v533 = vunpack.c.0.s8 %v532
        %v534 = vperm.slane %v530, %v533
        %v535 = vrot.slane %v528, 4
        %v536 = vsel %vm455, %v535, %v522
        %v538 = vunpack.c.l.s4 1934713408
        %v539 = vunpack.c.0.s8 %v538
        %v540 = vperm.slane %v536, %v539
        %v541 = vrot.slane %v540, 4
        %v542 = vsel %vm455, %v541, %v534
        %v543 = vrot.slane %v534, 4
        %v544 = vsel %vm455, %v540, %v543
        %545 = vrot.lane.b32.xlu0 %v448, 112
        %v546 = vpop.permute.xlu0 %545
        %547 = vrot.lane.b32.xlu0 %v452, 112
        %v548 = vpop.permute.xlu0 %547
        %v551 = vrot.slane %v546, 4
        %v552 = vsel %vm455, 0.0, %v551
        %v554 = vunpack.c.l.s4 1983009808
        %v555 = vunpack.c.0.s8 %v554
        %v556 = vperm.slane %v546, %v555
        %v558 = vunpack.c.l.s4 1983009808
        %v559 = vunpack.c.0.s8 %v558
        %v560 = vperm.slane %v552, %v559
        %v561 = vrot.slane %v548, 4
        %v562 = vsel %vm455, 0.0, %v561
        %v564 = vunpack.c.l.s4 1983009808
        %v565 = vunpack.c.0.s8 %v564
        %v566 = vperm.slane %v548, %v565
        %v568 = vunpack.c.l.s4 1983009808
        %v569 = vunpack.c.0.s8 %v568
        %v570 = vperm.slane %v562, %v569
        %v571 = vrot.slane %v566, 4
        %v572 = vsel %vm455, %v571, %v556
        %v573 = vrot.slane %v556, 4
        %v574 = vsel %vm455, %v566, %v573
        %v576 = vunpack.c.l.s4 1934713408
        %v577 = vunpack.c.0.s8 %v576
        %v578 = vperm.slane %v572, %v577
        %v580 = vunpack.c.l.s4 1934713408
        %v581 = vunpack.c.0.s8 %v580
        %v582 = vperm.slane %v574, %v581
        %v583 = vrot.slane %v570, 4
        %v584 = vsel %vm455, %v583, %v560
        %v585 = vrot.slane %v560, 4
        %v586 = vsel %vm455, %v570, %v585
        %v588 = vunpack.c.l.s4 1934713408
        %v589 = vunpack.c.0.s8 %v588
        %v590 = vperm.slane %v584, %v589
        %v592 = vunpack.c.l.s4 1934713408
        %v593 = vunpack.c.0.s8 %v592
        %v594 = vperm.slane %v586, %v593
        %v595 = vrot.slane %v578, 4
        %v596 = vsel %vm455, 0.0, %v595
        %v597 = vrot.slane %v582, 4
        %v598 = vsel %vm455, 0.0, %v597
        %v599 = vrot.slane %v590, 4
        %v600 = vsel %vm455, 0.0, %v599
        %v601 = vrot.slane %v594, 4
        %v602 = vsel %vm455, 0.0, %v601
        %v603 = vsel %vm455, %v597, %v578
        %v605 = vunpack.c.l.s4 1983009808
        %v606 = vunpack.c.0.s8 %v605
        %v607 = vperm.slane %v603, %v606
        %v608 = vrot.slane %v598, 4
        %v609 = vsel %vm455, %v608, %v596
        %v611 = vunpack.c.l.s4 1983009808
        %v612 = vunpack.c.0.s8 %v611
        %v613 = vperm.slane %v609, %v612
        %v614 = vsel %vm455, %v601, %v590
        %v616 = vunpack.c.l.s4 1983009808
        %v617 = vunpack.c.0.s8 %v616
        %v618 = vperm.slane %v614, %v617
        %v619 = vrot.slane %v602, 4
        %v620 = vsel %vm455, %v619, %v600
        %v622 = vunpack.c.l.s4 1983009808
        %v623 = vunpack.c.0.s8 %v622
        %v624 = vperm.slane %v620, %v623
        %v625 = vrot.slane %v613, 4
        %v626 = vsel %vm455, %v625, %v607
        %v628 = vunpack.c.l.s4 1934713408
        %v629 = vunpack.c.0.s8 %v628
        %v630 = vperm.slane %v626, %v629
        %v631 = vrot.slane %v624, 4
        %v632 = vsel %vm455, %v631, %v618
        %v634 = vunpack.c.l.s4 1934713408
        %v635 = vunpack.c.0.s8 %v634
        %v636 = vperm.slane %v632, %v635
        %v637 = vrot.slane %v636, 4
        %v638 = vsel %vm455, %v637, %v630
        %v639 = vrot.slane %v630, 4
        %v640 = vsel %vm455, %v636, %v639
        %641 = vrot.lane.b32.xlu0 %v448, 96
        %v642 = vpop.permute.xlu0 %641
        %643 = vrot.lane.b32.xlu0 %v452, 96
        %v644 = vpop.permute.xlu0 %643
        %v647 = vrot.slane %v642, 4
        %v648 = vsel %vm455, 0.0, %v647
        %v650 = vunpack.c.l.s4 1983009808
        %v651 = vunpack.c.0.s8 %v650
        %v652 = vperm.slane %v642, %v651
        %v654 = vunpack.c.l.s4 1983009808
        %v655 = vunpack.c.0.s8 %v654
        %v656 = vperm.slane %v648, %v655
        %v657 = vrot.slane %v644, 4
        %v658 = vsel %vm455, 0.0, %v657
        %v660 = vunpack.c.l.s4 1983009808
        %v661 = vunpack.c.0.s8 %v660
        %v662 = vperm.slane %v644, %v661
        %v664 = vunpack.c.l.s4 1983009808
        %v665 = vunpack.c.0.s8 %v664
        %v666 = vperm.slane %v658, %v665
        %v667 = vrot.slane %v662, 4
        %v668 = vsel %vm455, %v667, %v652
        %v669 = vrot.slane %v652, 4
        %v670 = vsel %vm455, %v662, %v669
        %v672 = vunpack.c.l.s4 1934713408
        %v673 = vunpack.c.0.s8 %v672
        %v674 = vperm.slane %v668, %v673
        %v676 = vunpack.c.l.s4 1934713408
        %v677 = vunpack.c.0.s8 %v676
        %v678 = vperm.slane %v670, %v677
        %v679 = vrot.slane %v666, 4
        %v680 = vsel %vm455, %v679, %v656
        %v681 = vrot.slane %v656, 4
        %v682 = vsel %vm455, %v666, %v681
        %v684 = vunpack.c.l.s4 1934713408
        %v685 = vunpack.c.0.s8 %v684
        %v686 = vperm.slane %v680, %v685
        %v688 = vunpack.c.l.s4 1934713408
        %v689 = vunpack.c.0.s8 %v688
        %v690 = vperm.slane %v682, %v689
        %v691 = vrot.slane %v674, 4
        %v692 = vsel %vm455, 0.0, %v691
        %v693 = vrot.slane %v678, 4
        %v694 = vsel %vm455, 0.0, %v693
        %v695 = vrot.slane %v686, 4
        %v696 = vsel %vm455, 0.0, %v695
        %v697 = vrot.slane %v690, 4
        %v698 = vsel %vm455, 0.0, %v697
        %v699 = vsel %vm455, %v693, %v674
        %v701 = vunpack.c.l.s4 1983009808
        %v702 = vunpack.c.0.s8 %v701
        %v703 = vperm.slane %v699, %v702
        %v704 = vrot.slane %v694, 4
        %v705 = vsel %vm455, %v704, %v692
        %v707 = vunpack.c.l.s4 1983009808
        %v708 = vunpack.c.0.s8 %v707
        %v709 = vperm.slane %v705, %v708
        %v710 = vsel %vm455, %v697, %v686
        %v712 = vunpack.c.l.s4 1983009808
        %v713 = vunpack.c.0.s8 %v712
        %v714 = vperm.slane %v710, %v713
        %v715 = vrot.slane %v698, 4
        %v716 = vsel %vm455, %v715, %v696
        %v718 = vunpack.c.l.s4 1983009808
        %v719 = vunpack.c.0.s8 %v718
        %v720 = vperm.slane %v716, %v719
        %v721 = vrot.slane %v709, 4
        %v722 = vsel %vm455, %v721, %v703
        %v724 = vunpack.c.l.s4 1934713408
        %v725 = vunpack.c.0.s8 %v724
        %v726 = vperm.slane %v722, %v725
        %v727 = vrot.slane %v720, 4
        %v728 = vsel %vm455, %v727, %v714
        %v730 = vunpack.c.l.s4 1934713408
        %v731 = vunpack.c.0.s8 %v730
        %v732 = vperm.slane %v728, %v731
        %v733 = vrot.slane %v732, 4
        %v734 = vsel %vm455, %v733, %v726
        %v735 = vrot.slane %v726, 4
        %v736 = vsel %vm455, %v732, %v735
        %vm737 = vcmask 64512
        %v739 = vsel %vm737, %v542, 0
        %v742 = vsel %vm737, %v638, 0
        %744 = vmatpush.xpose.msra.mxu0 0.0
        %745 = vmatpush.xpose.msra.mxu0 0.0
        %746 = vmatpush.xpose.msra.mxu0 0.0
        %747 = vmatpush.xpose.msra.mxu0 0.0
        %748 = vmatpush.xpose.msra.mxu0 0.0
        %749 = vmatpush.xpose.msra.mxu0 0.0
        %750 = vmatpush.xpose.msra.mxu0 0.0
        %751 = vmatpush.xpose.msra.mxu0 0.0
        %752 = vmatpush.xpose.msra.mxu0 0.0
        %753 = vmatpush.xpose.msra.mxu0 0.0
        %754 = vmatpush.xpose.msra.mxu0 0.0
        %755 = vmatpush.xpose.msra.mxu0 0.0
        %756 = vmatpush.xpose.msra.mxu0 0.0
        %757 = vmatpush.xpose.msra.mxu0 0.0
        %758 = vmatpush.xpose.msra.mxu0 0.0
        %759 = vmatpush.xpose.msra.mxu0 %v742
        %760 = vmatmul.f32.gmra.mxu0 %v739
        %v761 = vpop.f32.mrf.mxu0
        %v762 = vadd.f32 0.0, %v761
        %763 = vdwg.mxu0
        %v765 = vsel %vm737, %v544, 0
        %v768 = vsel %vm737, %v640, 0
        %770 = vmatpush.xpose.msra.mxu0 0.0
        %771 = vmatpush.xpose.msra.mxu0 0.0
        %772 = vmatpush.xpose.msra.mxu0 0.0
        %773 = vmatpush.xpose.msra.mxu0 0.0
        %774 = vmatpush.xpose.msra.mxu0 0.0
        %775 = vmatpush.xpose.msra.mxu0 0.0
        %776 = vmatpush.xpose.msra.mxu0 0.0
        %777 = vmatpush.xpose.msra.mxu0 0.0
        %778 = vmatpush.xpose.msra.mxu0 0.0
        %779 = vmatpush.xpose.msra.mxu0 0.0
        %780 = vmatpush.xpose.msra.mxu0 0.0
        %781 = vmatpush.xpose.msra.mxu0 0.0
        %782 = vmatpush.xpose.msra.mxu0 0.0
        %783 = vmatpush.xpose.msra.mxu0 0.0
        %784 = vmatpush.xpose.msra.mxu0 0.0
        %785 = vmatpush.xpose.msra.mxu0 %v768
        %786 = vmatmul.f32.gmra.mxu0 %v765
        %v787 = vpop.f32.mrf.mxu0
        %v788 = vadd.f32 0.0, %v787
        %789 = vdwg.mxu0
        %v790 = vsel %vm737, %v762, -inf
        %791 = vmax.xlane.f32.xlu0 %v790
        %v792 = vpop.xlane.xlu0 %791
        %v793 = vsel %vm737, %v788, -inf
        %794 = vmax.xlane.f32.xlu0 %v793
        %v795 = vpop.xlane.xlu0 %794
        %v796 = vsub.f32 %v762, %v792
        %v797 = vsub.f32 %v788, %v795
        %v798 = vmul.f32 %v796, 1.442695
        %v799 = vpow.pop %v798
        %v800 = vmul.f32 %v797, 1.442695
        %v801 = vpow.pop %v800
        %v802 = vsel %vm737, %v799, 0.0
        %803 = vadd.xlane.f32.xlu0 %v802
        %v804 = vpop.xlane.xlu0 %803
        %v805 = vsel %vm737, %v801, 0.0
        %806 = vadd.xlane.f32.xlu0 %v805
        %v807 = vpop.xlane.xlu0 %806
        %v808 = vrcp.pop %v804
        %v809 = vmul.f32 %v804, %v808
        %v810 = vsub.f32 1.0, %v809
        %v811 = vmul.f32 %v808, %v810
        %v812 = vadd.f32 %v808, %v811
        %vm813 = vweird.f32 %v804
        %vm814 = vweird.f32 %v808
        %vm815 = vmor %vm813, %vm814
        %v816 = vsel %vm815, %v808, %v812
        %v817 = vand.u32 2147483647, %v804
        %vm818 = vcmp.eq.f32.partialorder %v817, 8.507059e+37
        %v819 = vand.u32 %v804, 2147483648
        %v820 = vor.u32 1.1754944e-38, %v819
        %v821 = vsel %vm818, %v820, %v816
        %v822 = vmul.f32 1.0, %v821
        %v823 = vrcp.pop %v807
        %v824 = vmul.f32 %v807, %v823
        %v825 = vsub.f32 1.0, %v824
        %v826 = vmul.f32 %v823, %v825
        %v827 = vadd.f32 %v823, %v826
        %vm828 = vweird.f32 %v807
        %vm829 = vweird.f32 %v823
        %vm830 = vmor %vm828, %vm829
        %v831 = vsel %vm830, %v823, %v827
        %v832 = vand.u32 2147483647, %v807
        %vm833 = vcmp.eq.f32.partialorder %v832, 8.507059e+37
        %v834 = vand.u32 %v807, 2147483648
        %v835 = vor.u32 1.1754944e-38, %v834
        %v836 = vsel %vm833, %v835, %v831
        %v837 = vmul.f32 1.0, %v836
        %v838 = vmul.f32 %v799, %v822
        %v839 = vmul.f32 %v801, %v837
        %840 = vst.msk [vmem:[%s409] sm:$0xff] %vm737, %v838
        %841 = vst.msk [vmem:[%s409 + $0x8] sm:$0xff] %vm737, %v839
        %v843 = vsel %vm737, %v838, 0
        %845 = vmatpush.msra.mxu0 0.0
        %846 = vmatpush.msra.mxu0 0.0
        %847 = vmatpush.msra.mxu0 0.0
        %848 = vmatpush.msra.mxu0 0.0
        %849 = vmatpush.msra.mxu0 0.0
        %850 = vmatpush.msra.mxu0 0.0
        %851 = vmatpush.msra.mxu0 0.0
        %852 = vmatpush.msra.mxu0 0.0
        %853 = vmatpush.msra.mxu0 0.0
        %854 = vmatpush.msra.mxu0 0.0
        %855 = vmatpush.msra.mxu0 0.0
        %856 = vmatpush.msra.mxu0 0.0
        %857 = vmatpush.msra.mxu0 0.0
        %858 = vmatpush.msra.mxu0 0.0
        %859 = vmatpush.msra.mxu0 0.0
        %860 = vmatpush.msra.mxu0 %v734
        %861 = vmatmul.f32.gmra.mxu0 %v843
        %v862 = vpop.f32.mrf.mxu0
        %v863 = vadd.f32 0.0, %v862
        %864 = vdwg.mxu0
        %v866 = vsel %vm737, %v839, 0
        %868 = vmatpush.msra.mxu0 0.0
        %869 = vmatpush.msra.mxu0 0.0
        %870 = vmatpush.msra.mxu0 0.0
        %871 = vmatpush.msra.mxu0 0.0
        %872 = vmatpush.msra.mxu0 0.0
        %873 = vmatpush.msra.mxu0 0.0
        %874 = vmatpush.msra.mxu0 0.0
        %875 = vmatpush.msra.mxu0 0.0
        %876 = vmatpush.msra.mxu0 0.0
        %877 = vmatpush.msra.mxu0 0.0
        %878 = vmatpush.msra.mxu0 0.0
        %879 = vmatpush.msra.mxu0 0.0
        %880 = vmatpush.msra.mxu0 0.0
        %881 = vmatpush.msra.mxu0 0.0
        %882 = vmatpush.msra.mxu0 0.0
        %883 = vmatpush.msra.mxu0 %v736
        %884 = vmatmul.f32.gmra.mxu0 %v866
        %v885 = vpop.f32.mrf.mxu0
        %v886 = vadd.f32 0.0, %v885
        %887 = vdwg.mxu0
        %v888 = vrot.slane %v863, 4
        %v889 = vsel %vm455, 0.0, %v888
        %v891 = vunpack.c.l.s4 1983009808
        %v892 = vunpack.c.0.s8 %v891
        %v893 = vperm.slane %v863, %v892
        %v895 = vunpack.c.l.s4 1983009808
        %v896 = vunpack.c.0.s8 %v895
        %v897 = vperm.slane %v889, %v896
        %v898 = vrot.slane %v886, 4
        %v899 = vsel %vm455, 0.0, %v898
        %v901 = vunpack.c.l.s4 1983009808
        %v902 = vunpack.c.0.s8 %v901
        %v903 = vperm.slane %v886, %v902
        %v905 = vunpack.c.l.s4 1983009808
        %v906 = vunpack.c.0.s8 %v905
        %v907 = vperm.slane %v899, %v906
        %v908 = vrot.slane %v903, 4
        %v909 = vsel %vm455, %v908, %v893
        %v910 = vrot.slane %v893, 4
        %v911 = vsel %vm455, %v903, %v910
        %v913 = vunpack.c.l.s4 1934713408
        %v914 = vunpack.c.0.s8 %v913
        %v915 = vperm.slane %v909, %v914
        %v917 = vunpack.c.l.s4 1934713408
        %v918 = vunpack.c.0.s8 %v917
        %v919 = vperm.slane %v911, %v918
        %v920 = vrot.slane %v907, 4
        %v921 = vsel %vm455, %v920, %v897
        %v922 = vrot.slane %v897, 4
        %v923 = vsel %vm455, %v907, %v922
        %v925 = vunpack.c.l.s4 1934713408
        %v926 = vunpack.c.0.s8 %v925
        %v927 = vperm.slane %v921, %v926
        %v929 = vunpack.c.l.s4 1934713408
        %v930 = vunpack.c.0.s8 %v929
        %v931 = vperm.slane %v923, %v930
        %v932 = vrot.slane %v915, 4
        %v933 = vsel %vm455, 0.0, %v932
        %v934 = vrot.slane %v919, 4
        %v935 = vsel %vm455, 0.0, %v934
        %v936 = vrot.slane %v927, 4
        %v937 = vsel %vm455, 0.0, %v936
        %v938 = vrot.slane %v931, 4
        %v939 = vsel %vm455, 0.0, %v938
        %v940 = vsel %vm455, %v934, %v915
        %v942 = vunpack.c.l.s4 1983009808
        %v943 = vunpack.c.0.s8 %v942
        %v944 = vperm.slane %v940, %v943
        %v945 = vrot.slane %v935, 4
        %v946 = vsel %vm455, %v945, %v933
        %v948 = vunpack.c.l.s4 1983009808
        %v949 = vunpack.c.0.s8 %v948
        %v950 = vperm.slane %v946, %v949
        %v951 = vsel %vm455, %v938, %v927
        %v953 = vunpack.c.l.s4 1983009808
        %v954 = vunpack.c.0.s8 %v953
        %v955 = vperm.slane %v951, %v954
        %v956 = vrot.slane %v939, 4
        %v957 = vsel %vm455, %v956, %v937
        %v959 = vunpack.c.l.s4 1983009808
        %v960 = vunpack.c.0.s8 %v959
        %v961 = vperm.slane %v957, %v960
        %v962 = vrot.slane %v950, 4
        %v963 = vsel %vm455, %v962, %v944
        %v965 = vunpack.c.l.s4 1934713408
        %v966 = vunpack.c.0.s8 %v965
        %v967 = vperm.slane %v963, %v966
        %v968 = vrot.slane %v961, 4
        %v969 = vsel %vm455, %v968, %v955
        %v971 = vunpack.c.l.s4 1934713408
        %v972 = vunpack.c.0.s8 %v971
        %v973 = vperm.slane %v969, %v972
        %v974 = vrot.slane %v973, 4
        %v975 = vsel %vm455, %v974, %v967
        %v976 = vrot.slane %v967, 4
        %v977 = vsel %vm455, %v973, %v976
        %979 = vrot.lane.b32.xlu0 %v977, 8
        %v980 = vpop.permute.xlu0 %979
        %v982 = vsel %vm737, %v975, %v980
        %v983 = vld [vmem:[#allocation2] sm:$0xff]
        %v984 = vld [vmem:[%s361] sm:$0xff]
        %v985 = vld [vmem:[%s361 + $0x8] sm:$0xff]
        %vm986 = vcmask 130048
        %v988 = vsel %vm986, %v982, 0
        %990 = vmatpush.msra.mxu0 0.0
        %991 = vmatpush.msra.mxu0 0.0
        %992 = vmatpush.msra.mxu0 0.0
        %993 = vmatpush.msra.mxu0 0.0
        %994 = vmatpush.msra.mxu0 0.0
        %995 = vmatpush.msra.mxu0 0.0
        %996 = vmatpush.msra.mxu0 0.0
        %997 = vmatpush.msra.mxu0 0.0
        %998 = vmatpush.msra.mxu0 0.0
        %999 = vmatpush.msra.mxu0 0.0
        %1000 = vmatpush.msra.mxu0 0.0
        %1001 = vmatpush.msra.mxu0 0.0
        %1002 = vmatpush.msra.mxu0 0.0
        %1003 = vmatpush.msra.mxu0 0.0
        %1004 = vmatpush.msra.mxu0 %v985
        %1005 = vmatpush.msra.mxu0 %v984
        %1006 = vmatmul.f32.gmra.mxu0 %v988
        %v1007 = vpop.f32.mrf.mxu0
        %v1008 = vadd.f32 0.0, %v1007
        %1009 = vdwg.mxu0
        %v1010 = vadd.f32 %v983, %v1008
        %1011 = vst.msk [vmem:[#allocation2] sm:$0xff] %vm426, %v1010
        %p1012 = scmp.eq.s32.totalorder %s38, 1
        // Predicated region
        $region61: #{tpu_custom_call.1} parent=39 // pred_check
          %p1013 = pneg %p1012
        $region62: #{tpu_custom_call.1} parent=39 // pred_check_branch
          %1015 = sbr.rel (%p1013) target = $region64
        $region63: #{tpu_custom_call.1} parent=39 // pred_region
          %v1016 = vld [vmem:[#allocation2] sm:$0xff]
          %v1017 = vld [vmem:[%s4] sm:$0x1]
          %v1019 = vperm.slane %v1017, 0
          %v1021 = vadd.f32 %v1016, %v1019
          %1022 = vst.msk [vmem:[%s402] sm:$0xff] %vm426, %v1021
        $region64: #{tpu_custom_call.1} parent=39 // pred_fallthru
          _
        %s1023 = sand.u32 %s178, 1
        %s1024 = scalar_lea.sflag [#allocation5], %s1023
        %s1025 = sand.u32 %s178, 1
        %s1026 = smul.addr %s1025, 8
        %s1027 = scalar_lea.vmem [#allocation11], %s1026
        %s1028 = sand.u32 %s206, 1
        %s1029 = scalar_lea.sflag [#allocation13], %s1028
        %s1030 = sand.u32 %s206, 1
        %s1031 = smul.addr %s1030, 16
        %s1032 = scalar_lea.vmem [#allocation12], %s1031
        // Predicated region
        $region65: #{tpu_custom_call.1} parent=39 // pred_check
          %p1033 = pneg %p188
        $region66: #{tpu_custom_call.1} parent=39 // pred_check_branch
          %1035 = sbr.rel (%p1033) target = $region68
        $region67: #{tpu_custom_call.1} parent=39 // pred_region
          %1037 = vsyncadd %s1024, 0
          %s1038 = smul.addr %s37, 8
          %s1039 = scalar_lea.hbm %s5, %s1038
          %s1041 = sshll.u32 %s1027, 4
          %s1042 = int_to_ptr.vmem [resolvable:$true] %s1041
          %s1043 = sshll.u32 %s1039, 4
          %s1044 = int_to_ptr.hbm [resolvable:$true] %s1043
          %1046 = dma.vmem_to_hbm [thread:$0]  %s1042, 128, %s1044, %s1024
        $region68: #{tpu_custom_call.1} parent=39 // pred_fallthru
          _
        // Predicated region
        $region69: #{tpu_custom_call.1} parent=39 // pred_check
          %p1047 = pneg %p216
        $region70: #{tpu_custom_call.1} parent=39 // pred_check_branch
          %1049 = sbr.rel (%p1047) target = $region72
        $region71: #{tpu_custom_call.1} parent=39 // pred_region
          %s1050 = smul.u32 2, %s38
          %1052 = vsyncadd %s1029, 0
          %s1053 = smul.addr %s37, 4
          %s1054 = sadd.s32 %s1050, %s1053
          %s1055 = smul.addr %s1054, 8
          %s1056 = scalar_lea.hbm %s6, %s1055
          %s1057 = sshll.u32 %s1032, 4
          %s1058 = int_to_ptr.vmem [resolvable:$true] %s1057
          %s1059 = sshll.u32 %s1056, 4
          %s1060 = int_to_ptr.hbm [resolvable:$true] %s1059
          %1065 = dma.vmem_to_hbm [thread:$0]  %s1058, 256, %s1060, %s1029, 128, 128, 8
        $region72: #{tpu_custom_call.1} parent=39 // pred_fallthru
          _
      $region40: #{tpu_custom_call.1} parent=5 // pred_fallthru
        _
      %p1066 = scmp.le.s32.totalorder 2, %s28
      // Predicated region
      $region73: #{tpu_custom_call.1} parent=5 // pred_check
        %p1067 = pneg %p1066
      $region74: #{tpu_custom_call.1} parent=5 // pred_check_branch
        %1069 = sbr.rel (%p1067) target = $region76
      $region75: #{tpu_custom_call.1} parent=5 // pred_region
        %s1070 = ssub.s32 %s28, 2
        // Predicated region
        $region77: #{tpu_custom_call.1} parent=75 // pred_check
          %p1071 = pneg %p194
        $region78: #{tpu_custom_call.1} parent=75 // pred_check_branch
          %1073 = sbr.rel (%p1071) target = $region80
        $region79: #{tpu_custom_call.1} parent=75 // pred_region
          %s1074 = sand.u32 %s179, 1
          %s1075 = scalar_lea.sflag [#allocation5], %s1074
          %s1076 = sand.u32 %s179, 1
          %s1077 = smul.addr %s1076, 8
          %s1078 = scalar_lea.vmem [#allocation11], %s1077
          %1080 = dma.done %s1075, 128
        $region80: #{tpu_custom_call.1} parent=75 // pred_fallthru
          _
        // Predicated region
        $region81: #{tpu_custom_call.1} parent=75 // pred_check
          %p1081 = pneg %p222
        $region82: #{tpu_custom_call.1} parent=75 // pred_check_branch
          %1083 = sbr.rel (%p1081) target = $region84
        $region83: #{tpu_custom_call.1} parent=75 // pred_region
          %s1084 = sand.u32 %s207, 1
          %s1085 = scalar_lea.sflag [#allocation13], %s1084
          %s1086 = sand.u32 %s207, 1
          %s1087 = smul.addr %s1086, 16
          %s1088 = scalar_lea.vmem [#allocation12], %s1087
          %1090 = dma.done %s1085, 256
        $region84: #{tpu_custom_call.1} parent=75 // pred_fallthru
          _
      $region76: #{tpu_custom_call.1} parent=5 // pred_fallthru
        _
    $region6: #{tpu_custom_call.1} parent=1 // loop_footer
      %s32 = sadd.s32 1, %s28
    $region7: #{tpu_custom_call.1} parent=1 // loop_footer_branch
      %27 = sbr.rel target = $region3
    $region8: #{tpu_custom_call.1} parent=1 // loop_exit
      _
    %1091 = vsyncpa [#allocation4], 1
    %s1092 = scalar_lea.sflag [#allocation4], 1
    %1093 = vsyncpa %s1092, 1
    %1094 = vsyncpa [#allocation7], 1
    %s1095 = scalar_lea.sflag [#allocation7], 1
    %1096 = vsyncpa %s1095, 1
    %1097 = vsyncpa [#allocation10], 1
    %s1098 = scalar_lea.sflag [#allocation10], 1
    %1099 = vsyncpa %s1098, 1
    %1100 = vsyncpa [#allocation5], 1
    %s1101 = scalar_lea.sflag [#allocation5], 1
    %1102 = vsyncpa %s1101, 1
    %1103 = vsyncpa [#allocation13], 1
    %s1104 = scalar_lea.sflag [#allocation13], 1
    %1105 = vsyncpa %s1104, 1

</llo_original>
